<compile_context>
chip_gen: v6e
topology: v6e:2x2x1
jax: 0.10.0
libtpu: 0.0.40
codegen_flags: <defaults>
</compile_context>

<pallas_src>
import functools

import jax
import jax.numpy as jnp
from jax.experimental import pallas as pl
from jax.experimental.pallas import tpu as pltpu


_FALLBACK_FLOPS = 10_000_000     # below this, XLA's fused GEMM beats Pallas launch


def _relu(v):
    return jnp.maximum(v, 0.0)


def _round_up(v, m):
    return (v + m - 1) // m * m


def _pick_tile(dim, unit, max_tile):
    """Largest multiple-of-`unit` tile <= max_tile dividing round_up(dim, unit)."""
    padded = _round_up(dim, unit)
    t = min(max_tile, padded)
    t -= t % unit
    t = max(t, unit)
    while padded % t:
        t -= unit
    return t, padded


def _megacore_split(Bp, Np, tm, tn):
    """Guarantee >= 2 blocks along a 'parallel' grid axis so both v7x TCs run."""
    if (Bp // tm) * (Np // tn) >= 2:
        return tm, tn
    if Np >= 256:                         # prefer N: each TC reads half the weight
        tn_new = _round_up(Np // 2, 128)
        while Np % tn_new:
            tn_new -= 128
        return tm, tn_new
    if Bp >= 32:
        tm_new = _round_up(Bp // 2, 16)
        while Bp % tm_new:
            tm_new -= 16
        return tm_new, tn
    return tm, tn                         # problem too small to split usefully


def _linear_act_kernel(x_ref, w_ref, b_ref, o_ref, acc_ref, *, activation, cast_x):
    k = pl.program_id(2)

    @pl.when(k == 0)
    def _():
        # Bias folded into accumulator init: saves a (tm, tn) zero-store plus
        # a (tm, tn) VPU add in the finalize step.
        acc_ref[...] = jnp.broadcast_to(b_ref[...], acc_ref.shape)

    x = x_ref[...]
    if cast_x:                            # f32 activations: cast per tile on the VPU
        x = x.astype(jnp.bfloat16)
    acc_ref[...] += jnp.dot(x, w_ref[...], preferred_element_type=jnp.float32)

    @pl.when(k == pl.num_programs(2) - 1)
    def _():
        o_ref[...] = activation(acc_ref[...]).astype(o_ref.dtype)


class PallasHiddenUnits:
    """Pallas equivalent of HIDDEN_UNITS: y = activation(x @ W.T + b).

    Weight transpose / pad / bf16 cast happens ONCE here, not per forward call.
    `w` is in PyTorch layout [out_channels, in_channels]; `b` is [out_channels].
    """

    def __init__(self, w, b, activation=_relu):
        Cout, Cin = w.shape
        self.Cin, self.Cout = Cin, Cout
        self.activation = activation

        # N / K tiles depend only on the weight shape -> fixed at init.
        self.tk, self.Kp = _pick_tile(Cin, 128, 512)
        self.tn, self.Np = _pick_tile(Cout, 128, 512)

        wt = w.T.astype(jnp.bfloat16)                  # [Cin, Cout]
        if (Cin, Cout) != (self.Kp, self.Np):
            wt = jnp.pad(wt, ((0, self.Kp - Cin), (0, self.Np - Cout)))
        self.wtb = wt                                  # cached bf16 W.T (padded)

        bb = b.astype(jnp.float32).reshape(1, Cout)
        if Cout != self.Np:
            bb = jnp.pad(bb, ((0, 0), (0, self.Np - Cout)))
        self.bb = bb                                   # cached f32 bias (padded)

    def __call__(self, x):
        B, Cin = x.shape
        assert Cin == self.Cin, f"expected last dim {self.Cin}, got {Cin}"

        # Tiny problems: pad/launch/slice overhead dwarfs compute -> plain XLA.
        if 2 * B * self.Cin * self.Cout < _FALLBACK_FLOPS:
            wt = self.wtb[: self.Cin, : self.Cout]
            y = jnp.dot(x.astype(jnp.bfloat16), wt,
                        preferred_element_type=jnp.float32) + self.bb[0, : self.Cout]
            return self.activation(y).astype(x.dtype)

        tm, Bp = _pick_tile(B, 16, 512)
        tk, tn, Kp, Np = self.tk, self.tn, self.Kp, self.Np
        tm, tn = _megacore_split(Bp, Np, tm, tn)       # keep both v7x TCs busy
        grid = (Bp // tm, Np // tn, Kp // tk)

        # x staging: skip pad / cast passes whenever possible.
        if B == Bp and Cin == Kp:
            if x.dtype == jnp.bfloat16 or grid[1] <= 2:
                xk = x                                 # cast per tile in the kernel
            else:
                xk = x.astype(jnp.bfloat16)            # re-read >2x: one cast pass wins
        else:
            xk = jnp.pad(x.astype(jnp.bfloat16), ((0, Bp - B), (0, Kp - Cin)))
        cast_x = xk.dtype != jnp.bfloat16

        w_spec = pl.BlockSpec((tk, tn), lambda i, j, k: (k, j))
        if grid[2] >= 3:
            # Deep K grid: 3-deep weight pipeline hides exposed weight DMA (v6e).
            w_spec = pl.BlockSpec((tk, tn), lambda i, j, k: (k, j),
                                  pipeline_mode=pl.Buffered(3))

        out_itemsize = jnp.dtype(x.dtype).itemsize
        flops = 2 * Bp * Kp * Np
        bytes_accessed = (grid[1] * Bp * Kp * xk.dtype.itemsize     # x per N-block
                          + grid[0] * Kp * Np * 2                   # W per M-block
                          + Bp * Np * out_itemsize + Np * 4)

        out = pl.pallas_call(
            functools.partial(_linear_act_kernel,
                              activation=self.activation, cast_x=cast_x),
            out_shape=jax.ShapeDtypeStruct((Bp, Np), x.dtype),
            grid_spec=pltpu.PrefetchScalarGridSpec(
                num_scalar_prefetch=0,
                grid=grid,
                in_specs=[
                    pl.BlockSpec((tm, tk), lambda i, j, k: (i, k)),   # x tile
                    w_spec,                                           # W.T tile
                    pl.BlockSpec((1, tn), lambda i, j, k: (0, j)),    # bias tile
                ],
                out_specs=pl.BlockSpec((tm, tn), lambda i, j, k: (i, j)),
                scratch_shapes=[pltpu.VMEM((tm, tn), jnp.float32)],
            ),
            compiler_params=pltpu.CompilerParams(
                dimension_semantics=("parallel", "parallel", "arbitrary"),
                vmem_limit_bytes=32 << 20,   # safe on v5e/v6e (128 MiB) and v7x (64 MiB)
            ),
            cost_estimate=pl.CostEstimate(flops=flops,
                                          bytes_accessed=bytes_accessed,
                                          transcendentals=0),
        )(xk, self.wtb, self.bb)

        if B == Bp and self.Cout == Np:
            return out                     # fast path: no output slice / copy
        return out[:B, : self.Cout]


def hidden_units_forward(x, w, b, activation=_relu):
    """One-shot functional form (re-prepares the weight; prefer the class when
    the same weight is reused across calls)."""
    return PallasHiddenUnits(w, b, activation)(x)


if __name__ == "__main__":
    key = jax.random.PRNGKey(0)

    def make_case(k, batch, cin, cout):
        kx, kw, kb = jax.random.split(k, 3)
        xv = jax.random.normal(kx, (batch, cin), dtype=jnp.float32)
        bound = 1.0 / (cin ** 0.5)
        wv = jax.random.uniform(kw, (cout, cin), jnp.float32, -bound, bound)
        bv = jax.random.uniform(kb, (cout,), jnp.float32, -bound, bound)
        return xv, wv, bv

    def ref_forward(xv, wv, bv):
        y = jnp.dot(xv.astype(jnp.bfloat16), wv.T.astype(jnp.bfloat16),
                    preferred_element_type=jnp.float32) + bv.astype(jnp.float32)
        return jnp.maximum(y, 0.0)

    k1, k2, k3 = jax.random.split(key, 3)

    # Case 1: tile-aligned shapes -> fast path (no pad/cast/slice), megacore split on N.
    x, w, b = make_case(k1, 128, 256, 256)
    layer = PallasHiddenUnits(w, b)                 # weight prepared once here
    out = jax.block_until_ready(layer(x))
    assert out.shape == (128, 256) and out.dtype == x.dtype
    assert jnp.allclose(out, ref_forward(x, w, b), atol=1e-2, rtol=1e-2)
    out_again = jax.block_until_ready(layer(x))     # reuses cached bf16 W.T
    assert jnp.allclose(out_again, out)

    # Case 2: unaligned shapes -> padded Pallas path with output slice.
    x2, w2, b2 = make_case(k2, 200, 300, 260)
    layer2 = PallasHiddenUnits(w2, b2)
    out2 = jax.block_until_ready(layer2(x2))
    assert out2.shape == (200, 260)
    assert jnp.allclose(out2, ref_forward(x2, w2, b2), atol=1e-2, rtol=1e-2)

    # Case 3: tiny problem -> XLA fallback (Pallas launch overhead would dominate).
    x3, w3, b3 = make_case(k3, 8, 32, 64)
    layer3 = PallasHiddenUnits(w3, b3)
    out3 = jax.block_until_ready(layer3(x3))
    assert out3.shape == (8, 64)
    assert jnp.allclose(out3, ref_forward(x3, w3, b3), atol=1e-2, rtol=1e-2)

    print("KERNEL_OK")
</pallas_src>

<mosaic_0001>
module attributes {stable_mosaic.version = 11 : i64} {
  func.func @_linear_act_kernel(%arg0: i32, %arg1: i32, %arg2: i32, %arg3: memref<128x256xf32, #tpu.memory_space<vmem>>, %arg4: memref<256x128xbf16, #tpu.memory_space<vmem>>, %arg5: memref<1x128xf32, #tpu.memory_space<vmem>>, %arg6: memref<128x128xf32, #tpu.memory_space<vmem>>, %arg7: memref<128x128xf32, #tpu.memory_space<vmem>>) attributes {dimension_semantics = [#tpu.dimension_semantics<parallel>, #tpu.dimension_semantics<parallel>, #tpu.dimension_semantics<arbitrary>], iteration_bounds = array<i64: 1, 2, 1>, scalar_prefetch = 0 : i64, scratch_operands = 1 : i64, tpu.core_type = #tpu.core_type<tc>, window_params = [{transform_indices = @transform_0, window_bounds = array<i64: 128, 256>}, {transform_indices = @transform_1, window_bounds = array<i64: 256, 128>}, {transform_indices = @transform_2, window_bounds = array<i64: 1, 128>}, {transform_indices = @transform_3, window_bounds = array<i64: 128, 128>}]} {
    %c0_i32 = arith.constant 0 : i32
    %0 = arith.cmpi eq, %arg2, %c0_i32 : i32
    %1 = arith.extui %0 : i1 to i32
    %c0_i32_0 = arith.constant 0 : i32
    %2 = arith.cmpi ne, %1, %c0_i32_0 : i32
    scf.if %2 {
      %c0_10 = arith.constant 0 : index
      %c0_11 = arith.constant 0 : index
      %13 = vector.load %arg5[%c0_10, %c0_11] : memref<1x128xf32, #tpu.memory_space<vmem>>, vector<1x128xf32>
      %14 = vector.shape_cast %13 : vector<1x128xf32> to vector<1x128xf32>
      %15 = vector.broadcast %14 : vector<1x128xf32> to vector<128x128xf32>
      %c0_12 = arith.constant 0 : index
      %c0_13 = arith.constant 0 : index
      %16 = vector.load %arg7[%c0_12, %c0_13] : memref<128x128xf32, #tpu.memory_space<vmem>>, vector<128x128xf32>
      tpu.vector_store %arg7[%c0_12, %c0_13], %15 {strides = array<i32>} : memref<128x128xf32, #tpu.memory_space<vmem>>, vector<128x128xf32>,
    } else {
    }
    %c0 = arith.constant 0 : index
    %c0_1 = arith.constant 0 : index
    %3 = vector.load %arg3[%c0, %c0_1] : memref<128x256xf32, #tpu.memory_space<vmem>>, vector<128x256xf32>
    %4 = arith.truncf %3 : vector<128x256xf32> to vector<128x256xbf16>
    %c0_2 = arith.constant 0 : index
    %c0_3 = arith.constant 0 : index
    %5 = vector.load %arg7[%c0_2, %c0_3] : memref<128x128xf32, #tpu.memory_space<vmem>>, vector<128x128xf32>
    %c0_4 = arith.constant 0 : index
    %c0_5 = arith.constant 0 : index
    %6 = vector.load %arg4[%c0_4, %c0_5] : memref<256x128xbf16, #tpu.memory_space<vmem>>, vector<256x128xbf16>
    %cst = arith.constant dense<0.000000e+00> : vector<128x128xf32>
    %7 = tpu.matmul %4, %6, %cst {dimension_numbers = #tpu.dot_dimension_numbers<[1], [0], [0], [1], [0, 0, 1, 1], [], []>} : vector<128x256xbf16>, vector<256x128xbf16>, vector<128x128xf32> -> vector<128x128xf32>
    %8 = arith.addf %5, %7 : vector<128x128xf32>
    %c0_6 = arith.constant 0 : index
    %c0_7 = arith.constant 0 : index
    %9 = vector.load %arg7[%c0_6, %c0_7] : memref<128x128xf32, #tpu.memory_space<vmem>>, vector<128x128xf32>
    tpu.vector_store %arg7[%c0_6, %c0_7], %8 {strides = array<i32>} : memref<128x128xf32, #tpu.memory_space<vmem>>, vector<128x128xf32>,
    %c0_i32_8 = arith.constant 0 : i32
    %10 = arith.cmpi eq, %arg2, %c0_i32_8 : i32
    %11 = arith.extui %10 : i1 to i32
    %c0_i32_9 = arith.constant 0 : i32
    %12 = arith.cmpi ne, %11, %c0_i32_9 : i32
    scf.if %12 {
      %c0_10 = arith.constant 0 : index
      %c0_11 = arith.constant 0 : index
      %13 = vector.load %arg7[%c0_10, %c0_11] : memref<128x128xf32, #tpu.memory_space<vmem>>, vector<128x128xf32>
      %cst_12 = arith.constant 0.000000e+00 : f32
      %14 = vector.broadcast %cst_12 : f32 to vector<128x128xf32>
      %15 = arith.maximumf %13, %14 : vector<128x128xf32>
      %c0_13 = arith.constant 0 : index
      %c0_14 = arith.constant 0 : index
      %16 = vector.load %arg6[%c0_13, %c0_14] : memref<128x128xf32, #tpu.memory_space<vmem>>, vector<128x128xf32>
      tpu.vector_store %arg6[%c0_13, %c0_14], %15 {strides = array<i32>} : memref<128x128xf32, #tpu.memory_space<vmem>>, vector<128x128xf32>,
    } else {
    }
    return
  }
  func.func @transform_0(%arg0: i32, %arg1: i32, %arg2: i32) -> (i32, i32) {
    %c0_i32 = arith.constant 0 : i32
    return %arg0, %arg2 : i32, i32
  }
  func.func @transform_1(%arg0: i32, %arg1: i32, %arg2: i32) -> (i32, i32) {
    %c0_i32 = arith.constant 0 : i32
    return %arg2, %arg1 : i32, i32
  }
  func.func @transform_2(%arg0: i32, %arg1: i32, %arg2: i32) -> (i32, i32) {
    %c0_i32 = arith.constant 0 : i32
    %c0_i32_0 = arith.constant 0 : i32
    return %c0_i32, %arg1 : i32, i32
  }
  func.func @transform_3(%arg0: i32, %arg1: i32, %arg2: i32) -> (i32, i32) {
    %c0_i32 = arith.constant 0 : i32
    return %arg0, %arg1 : i32, i32
  }
}

</mosaic_0001>

<llo_original>
// kernel: tpu_custom_call.1
$region0: #{tpu_custom_call.1}
  #allocation0 [shape = 'u32[]', space=smem, size = 0x4, offset = 0x4, fixed_abs, tag = 'smem constant byte address 0x4 - core index']
  #allocation1 [shape = 'u32[144,128]{1,0:T(1,128)}', space=vmem, size = 0x12000, scoped, tag = 'internal scratch']
  #allocation2 [shape = 'f32[128,128]{1,0:T(8,128)}', space=vmem, size = 0x10000, scoped, tag = 'scratch operand']
  %s0 = inlined_call_operand.hbm [shape: f32[128,256], index: 0, kind: input, shape index: {}]
  %s1 = inlined_call_operand.hbm [shape: bf16[256,256], index: 1, kind: input, shape index: {}]
  %s2 = inlined_call_operand.vmem [shape: f32[1,256], index: 2, kind: input, shape index: {}]
  %s3 = inlined_call_operand.hbm [shape: f32[128,256], index: 3, kind: output, shape index: {}]
  %s4 = sld [smem:[#allocation0]]
  $region61: #{tpu_custom_call.1} parent=0
    _
  %s6 = ssub.s32 1, %s4
  %s7 = scalar_select 0, %s6, %s4
  $region1: #{tpu_custom_call.1} parent=0
    #allocation3 [shape = 'u8[131072]{0}', space=vmem, size = 0x20000, scoped, tag = 'input window, operand 0, single buffered']
    #allocation4 [shape = 's32[2]{0}', space=sflag, size = 0x8, scoped, tag = 'scoped memory for tpu_custom_call.1']
    #allocation5 [shape = 's32[2]{0}', space=sflag, size = 0x8, scoped, tag = 'scoped memory for tpu_custom_call.1']
    #allocation6 [shape = 'u8[131072]{0}', space=vmem, size = 0x20000, scoped, tag = 'input window, operand 1']
    #allocation7 [shape = 's32[2]{0}', space=sflag, size = 0x8, scoped, tag = 'scoped memory for tpu_custom_call.1']
    #allocation8 [shape = 'u8[131072]{0}', space=vmem, size = 0x20000, scoped, tag = 'output window, operand 0']
    %8 = vsyncpa [#allocation4], 0
    %9 = vsyncpa [#allocation7], 0
    %s10 = scalar_lea.sflag [#allocation7], 1
    %11 = vsyncpa %s10, 0
    %12 = vsyncpa [#allocation5], 0
    %s13 = scalar_lea.sflag [#allocation5], 1
    %14 = vsyncpa %s13, 0
    loop: start=0, step=1, limit=4
    $region2: #{tpu_custom_call.1} parent=1 // loop_pre_header
      _
    $region3: #{tpu_custom_call.1} parent=1 // loop_header
      %s16 = sphi 0, %s20
      %p17 = scmp.ge.s32.totalorder %s16, 4
      %s23 = sphi 0, %s42
      %s24 = sphi 0, %s38
      %s25 = sphi 0, %s34
      %s26 = sphi 0, %s23
      %s27 = sphi 0, %s24
      %s28 = sphi 0, %s25
      %s29 = sphi 0, %s26
      %s30 = sphi 0, %s27
      %s31 = sphi 0, %s28
      %s47 = sphi 0, %s49
      %s50 = sphi 0, %s47
      %s51 = sphi 0, %s50
      %s67 = sphi 0, %s51
      %s75 = sphi 0, %s77
      %s78 = sphi 0, %s75
      %s79 = sphi 0, %s78
      %s95 = sphi 0, %s79
      %s101 = sphi 0, %s103
      %s104 = sphi 0, %s101
      %s105 = sphi 0, %s104
      %s121 = sphi 0, %s105
      %s129 = sphi 0, %s131
      %s132 = sphi 0, %s129
      %s133 = sphi 0, %s132
      %s149 = sphi 0, %s133
    $region4: #{tpu_custom_call.1} parent=1 // loop_header_branch
      %19 = sbr.rel (%p17) target = $region8
    $region5: #{tpu_custom_call.1} parent=1 // loop_body
      %s21 = ssub.s32 %s16, 1
      %s22 = ssub.s32 %s16, 2
      %s32 = sadd.s32 1, %s25
      %p33 = scmp.ge.s32.totalorder %s32, 1
      %s34 = scalar_select %p33, 0, %s32
      %s35 = sadd.s32 1, %s24
      %s36 = scalar_select %p33, %s35, %s24
      %p37 = scmp.ge.s32.totalorder %s36, 2
      %s38 = scalar_select %p37, 0, %s36
      %s39 = sadd.s32 1, %s23
      %s40 = scalar_select %p37, %s39, %s23
      %p41 = scmp.ge.s32.totalorder %s40, 1
      %s42 = scalar_select %p41, 0, %s40
      %s43 = ssub.s32 %s23, %s42
      %s44 = ssub.s32 %s25, %s34
      %s45 = sor.u32 %s43, %s44
      %p46 = scmp.eq.s32.totalorder %s45, 0
      %s48 = sadd.s32 %s47, 1
      %s49 = scalar_select %p46, %s47, %s48
      %p52 = pneg %p46
      %p53 = scmp.eq.s32.totalorder %s16, 1
      %p54 = por %p52, %p53
      %p55 = scmp.ne.s32.totalorder %s47, %s50
      %p56 = scmp.eq.s32.totalorder %s16, 0
      %p57 = por %p55, %p56
      %p58 = scmp.ne.s32.totalorder %s47, %s50
      %p59 = scmp.eq.s32.totalorder %s21, 1
      %p60 = por %p58, %p59
      %p61 = scmp.ne.s32.totalorder %s50, %s51
      %p62 = scmp.eq.s32.totalorder %s21, 0
      %p63 = por %p61, %p62
      %p64 = scmp.ne.s32.totalorder %s50, %s51
      %p65 = scmp.eq.s32.totalorder %s22, 1
      %p66 = por %p64, %p65
      %p68 = scmp.ne.s32.totalorder %s51, %s67
      %p69 = scmp.eq.s32.totalorder %s22, 0
      %p70 = por %p68, %p69
      %s71 = ssub.s32 %s25, %s34
      %s72 = ssub.s32 %s24, %s38
      %s73 = sor.u32 %s71, %s72
      %p74 = scmp.eq.s32.totalorder %s73, 0
      %s76 = sadd.s32 %s75, 1
      %s77 = scalar_select %p74, %s75, %s76
      %p80 = pneg %p74
      %p81 = scmp.eq.s32.totalorder %s16, 1
      %p82 = por %p80, %p81
      %p83 = scmp.ne.s32.totalorder %s75, %s78
      %p84 = scmp.eq.s32.totalorder %s16, 0
      %p85 = por %p83, %p84
      %p86 = scmp.ne.s32.totalorder %s75, %s78
      %p87 = scmp.eq.s32.totalorder %s21, 1
      %p88 = por %p86, %p87
      %p89 = scmp.ne.s32.totalorder %s78, %s79
      %p90 = scmp.eq.s32.totalorder %s21, 0
      %p91 = por %p89, %p90
      %p92 = scmp.ne.s32.totalorder %s78, %s79
      %p93 = scmp.eq.s32.totalorder %s22, 1
      %p94 = por %p92, %p93
      %p96 = scmp.ne.s32.totalorder %s79, %s95
      %p97 = scmp.eq.s32.totalorder %s22, 0
      %p98 = por %p96, %p97
      %s99 = ssub.s32 %s24, %s38
      %p100 = scmp.eq.s32.totalorder %s99, 0
      %s102 = sadd.s32 %s101, 1
      %s103 = scalar_select %p100, %s101, %s102
      %p106 = pneg %p100
      %p107 = scmp.eq.s32.totalorder %s16, 1
      %p108 = por %p106, %p107
      %p109 = scmp.ne.s32.totalorder %s101, %s104
      %p110 = scmp.eq.s32.totalorder %s16, 0
      %p111 = por %p109, %p110
      %p112 = scmp.ne.s32.totalorder %s101, %s104
      %p113 = scmp.eq.s32.totalorder %s21, 1
      %p114 = por %p112, %p113
      %p115 = scmp.ne.s32.totalorder %s104, %s105
      %p116 = scmp.eq.s32.totalorder %s21, 0
      %p117 = por %p115, %p116
      %p118 = scmp.ne.s32.totalorder %s104, %s105
      %p119 = scmp.eq.s32.totalorder %s22, 1
      %p120 = por %p118, %p119
      %p122 = scmp.ne.s32.totalorder %s105, %s121
      %p123 = scmp.eq.s32.totalorder %s22, 0
      %p124 = por %p122, %p123
      %s125 = ssub.s32 %s23, %s42
      %s126 = ssub.s32 %s24, %s38
      %s127 = sor.u32 %s125, %s126
      %p128 = scmp.eq.s32.totalorder %s127, 0
      %s130 = sadd.s32 %s129, 1
      %s131 = scalar_select %p128, %s129, %s130
      %p134 = pneg %p128
      %p135 = scmp.eq.s32.totalorder %s16, 1
      %p136 = por %p134, %p135
      %p137 = scmp.ne.s32.totalorder %s129, %s132
      %p138 = scmp.eq.s32.totalorder %s16, 0
      %p139 = por %p137, %p138
      %p140 = scmp.ne.s32.totalorder %s129, %s132
      %p141 = scmp.eq.s32.totalorder %s21, 1
      %p142 = por %p140, %p141
      %p143 = scmp.ne.s32.totalorder %s132, %s133
      %p144 = scmp.eq.s32.totalorder %s21, 0
      %p145 = por %p143, %p144
      %p146 = scmp.ne.s32.totalorder %s132, %s133
      %p147 = scmp.eq.s32.totalorder %s22, 1
      %p148 = por %p146, %p147
      %p150 = scmp.ne.s32.totalorder %s133, %s149
      %p151 = scmp.eq.s32.totalorder %s22, 0
      %p152 = por %p150, %p151
      %p153 = scmp.le.s32.totalorder 1, %s16
      %p154 = scmp.lt.s32.totalorder %s16, 3
      %p155 = pnand %p153, %p154
      %p156 = pneg %p155
      // Predicated region
      $region9: #{tpu_custom_call.1} parent=5 // pred_check
        _
      $region10: #{tpu_custom_call.1} parent=5 // pred_check_branch
        %158 = sbr.rel (%p155) target = $region12
      $region11: #{tpu_custom_call.1} parent=5 // pred_region
        %s159 = ssub.s32 %s16, 1
        // Predicated region
        $region13: #{tpu_custom_call.1} parent=11 // pred_check
          %p160 = pneg %p63
        $region14: #{tpu_custom_call.1} parent=11 // pred_check_branch
          %162 = sbr.rel (%p160) target = $region16
        $region15: #{tpu_custom_call.1} parent=11 // pred_region
          %s163 = smul.u32 16, %s26
          %s164 = smul.u32 2, %s28
          %s166 = ssub.s32 4096, 4096
          %167 = vsyncadd [#allocation4], %s166
          %s168 = smul.addr %s163, 2
          %s169 = sadd.s32 %s164, %s168
          %s170 = smul.addr %s169, 128
          %s171 = scalar_lea.hbm %s0, %s170
          %s172 = sshll.u32 [#allocation3], 4
          %s173 = int_to_ptr.vmem [resolvable:$true] %s172
          %178 = dma.hbm_to_vmem [thread:$0]  %s171, 4096, %s173, [#allocation4], 256, 256, 16
        $region16: #{tpu_custom_call.1} parent=11 // pred_fallthru
          _
      $region12: #{tpu_custom_call.1} parent=5 // pred_fallthru
        _
      %p179 = scmp.lt.s32.totalorder %s16, 2
      // Predicated region
      $region17: #{tpu_custom_call.1} parent=5 // pred_check
        %p180 = pneg %p179
      $region18: #{tpu_custom_call.1} parent=5 // pred_check_branch
        %182 = sbr.rel (%p180) target = $region20
      $region19: #{tpu_custom_call.1} parent=5 // pred_region
        // Predicated region
        $region21: #{tpu_custom_call.1} parent=19 // pred_check
          %p183 = pneg %p85
        $region22: #{tpu_custom_call.1} parent=19 // pred_check_branch
          %185 = sbr.rel (%p183) target = $region24
        $region23: #{tpu_custom_call.1} parent=19 // pred_region
          %s186 = sand.u32 %s75, 1
          %s187 = scalar_lea.sflag [#allocation7], %s186
          %s188 = sand.u32 %s75, 1
          %s189 = smul.addr %s188, 128
          %s190 = scalar_lea.vmem [#allocation6], %s189
          %s191 = smul.u32 32, %s25
          %s193 = ssub.s32 2048, 2048
          %194 = vsyncadd %s187, %s193
          %s195 = smul.addr %s191, 2
          %s196 = sadd.s32 %s24, %s195
          %s197 = smul.addr %s196, 64
          %s198 = scalar_lea.hbm %s1, %s197
          %s199 = sshll.u32 %s190, 4
          %s200 = int_to_ptr.vmem [resolvable:$true] %s199
          %205 = dma.hbm_to_vmem [thread:$0]  %s198, 2048, %s200, %s187, 128, 64, 4
        $region24: #{tpu_custom_call.1} parent=19 // pred_fallthru
          _
        // Predicated region
        $region25: #{tpu_custom_call.1} parent=19 // pred_check
          %p206 = pneg %p111
        $region26: #{tpu_custom_call.1} parent=19 // pred_check_branch
          %208 = sbr.rel (%p206) target = $region28
        $region27: #{tpu_custom_call.1} parent=19 // pred_region
          %p209 = scmp.lt.s32.totalorder %s24, 1
          %s210 = scalar_select %p209, %s24, 1
          %s211 = scalar_lea.vmem %s2, %s210
        $region28: #{tpu_custom_call.1} parent=19 // pred_fallthru
          _
      $region20: #{tpu_custom_call.1} parent=5 // pred_fallthru
        _
      %p212 = scmp.le.s32.totalorder 1, %s16
      %p213 = scmp.lt.s32.totalorder %s16, 3
      %p214 = pnand %p212, %p213
      %p215 = pneg %p214
      // Predicated region
      $region29: #{tpu_custom_call.1} parent=5 // pred_check
        _
      $region30: #{tpu_custom_call.1} parent=5 // pred_check_branch
        %217 = sbr.rel (%p214) target = $region32
      $region31: #{tpu_custom_call.1} parent=5 // pred_region
        %s218 = ssub.s32 %s16, 1
        // Predicated region
        $region33: #{tpu_custom_call.1} parent=31 // pred_check
          %p219 = pneg %p63
        $region34: #{tpu_custom_call.1} parent=31 // pred_check_branch
          %221 = sbr.rel (%p219) target = $region36
        $region35: #{tpu_custom_call.1} parent=31 // pred_region
          %222 = dma.done [#allocation4], 4096
        $region36: #{tpu_custom_call.1} parent=31 // pred_fallthru
          _
        %s223 = sand.u32 %s78, 1
        %s224 = scalar_lea.sflag [#allocation7], %s223
        %s225 = sand.u32 %s78, 1
        %s226 = smul.addr %s225, 128
        %s227 = scalar_lea.vmem [#allocation6], %s226
        // Predicated region
        $region37: #{tpu_custom_call.1} parent=31 // pred_check
          %p228 = pneg %p91
        $region38: #{tpu_custom_call.1} parent=31 // pred_check_branch
          %230 = sbr.rel (%p228) target = $region40
        $region39: #{tpu_custom_call.1} parent=31 // pred_region
          %231 = dma.done %s224, 2048
        $region40: #{tpu_custom_call.1} parent=31 // pred_fallthru
          _
        %p232 = pneg %p63
        %p233 = pneg %p60
        %s234 = sand.u32 %s78, 1
        %s235 = scalar_lea.sflag [#allocation7], %s234
        %s236 = sand.u32 %s78, 1
        %s237 = smul.addr %s236, 128
        %s238 = scalar_lea.vmem [#allocation6], %s237
        %p239 = pneg %p91
        %p240 = pneg %p88
        %p241 = scmp.lt.s32.totalorder %s27, 1
        %s242 = scalar_select %p241, %s27, 1
        %s243 = scalar_lea.vmem %s2, %s242
        %p244 = pneg %p117
        %p245 = pneg %p114
        %p246 = pneg %p145
        %p247 = pneg %p142
        %s248 = sand.u32 %s132, 1
        %s249 = scalar_lea.sflag [#allocation5], %s248
        %s250 = sand.u32 %s132, 1
        %s251 = smul.addr %s250, 128
        %s252 = scalar_lea.vmem [#allocation8], %s251
        %s253 = smul.u32 16, %s26
        %s254 = smul.u32 2, %s28
        %s255 = smul.u32 32, %s28
        %p256 = scmp.lt.s32.totalorder %s27, 1
        %s257 = scalar_select %p256, %s27, 1
        %s258 = scalar_lea.vmem %s2, %s257
        %s259 = smul.u32 16, %s26
        %p261 = scmp.eq.s32.totalorder %s28, 0
        // Predicated region
        $region41: #{tpu_custom_call.1} parent=31 // pred_check
          %p262 = pneg %p261
        $region42: #{tpu_custom_call.1} parent=31 // pred_check_branch
          %264 = sbr.rel (%p262) target = $region44
        $region43: #{tpu_custom_call.1} parent=31 // pred_region
          %v265 = vld [vmem:[%s258] sm:$0x1]
          %v267 = vlaneseq
          %v268 = vshrl.u32 %v267, 7
          %v269 = vsub.s32 0, %v268
          %v270 = vrot.slane %v265, %v269
          %272 = vst [vmem:[#allocation2] sm:$0xff] %v270
          %273 = vst [vmem:[#allocation2 + $0x8] sm:$0xff] %v270
          %274 = vst [vmem:[#allocation2 + $0x10] sm:$0xff] %v270
          %275 = vst [vmem:[#allocation2 + $0x18] sm:$0xff] %v270
          %276 = vst [vmem:[#allocation2 + $0x20] sm:$0xff] %v270
          %277 = vst [vmem:[#allocation2 + $0x28] sm:$0xff] %v270
          %278 = vst [vmem:[#allocation2 + $0x30] sm:$0xff] %v270
          %279 = vst [vmem:[#allocation2 + $0x38] sm:$0xff] %v270
          %280 = vst [vmem:[#allocation2 + $0x40] sm:$0xff] %v270
          %281 = vst [vmem:[#allocation2 + $0x48] sm:$0xff] %v270
          %282 = vst [vmem:[#allocation2 + $0x50] sm:$0xff] %v270
          %283 = vst [vmem:[#allocation2 + $0x58] sm:$0xff] %v270
          %284 = vst [vmem:[#allocation2 + $0x60] sm:$0xff] %v270
          %285 = vst [vmem:[#allocation2 + $0x68] sm:$0xff] %v270
          %286 = vst [vmem:[#allocation2 + $0x70] sm:$0xff] %v270
          %287 = vst [vmem:[#allocation2 + $0x78] sm:$0xff] %v270
        $region44: #{tpu_custom_call.1} parent=31 // pred_fallthru
          _
        %v288 = vld [vmem:[#allocation3] sm:$0xff]
        %v289 = vld [vmem:[#allocation3 + $0x8] sm:$0xff]
        %v290 = vld [vmem:[#allocation3 + $0x10] sm:$0xff]
        %v291 = vld [vmem:[#allocation3 + $0x18] sm:$0xff]
        %v292 = vld [vmem:[#allocation3 + $0x20] sm:$0xff]
        %v293 = vld [vmem:[#allocation3 + $0x28] sm:$0xff]
        %v294 = vld [vmem:[#allocation3 + $0x30] sm:$0xff]
        %v295 = vld [vmem:[#allocation3 + $0x38] sm:$0xff]
        %v296 = vld [vmem:[#allocation3 + $0x40] sm:$0xff]
        %v297 = vld [vmem:[#allocation3 + $0x48] sm:$0xff]
        %v298 = vld [vmem:[#allocation3 + $0x50] sm:$0xff]
        %v299 = vld [vmem:[#allocation3 + $0x58] sm:$0xff]
        %v300 = vld [vmem:[#allocation3 + $0x60] sm:$0xff]
        %v301 = vld [vmem:[#allocation3 + $0x68] sm:$0xff]
        %v302 = vld [vmem:[#allocation3 + $0x70] sm:$0xff]
        %v303 = vld [vmem:[#allocation3 + $0x78] sm:$0xff]
        %v304 = vld [vmem:[#allocation3 + $0x80] sm:$0xff]
        %v305 = vld [vmem:[#allocation3 + $0x88] sm:$0xff]
        %v306 = vld [vmem:[#allocation3 + $0x90] sm:$0xff]
        %v307 = vld [vmem:[#allocation3 + $0x98] sm:$0xff]
        %v308 = vld [vmem:[#allocation3 + $0xa0] sm:$0xff]
        %v309 = vld [vmem:[#allocation3 + $0xa8] sm:$0xff]
        %v310 = vld [vmem:[#allocation3 + $0xb0] sm:$0xff]
        %v311 = vld [vmem:[#allocation3 + $0xb8] sm:$0xff]
        %v312 = vld [vmem:[#allocation3 + $0xc0] sm:$0xff]
        %v313 = vld [vmem:[#allocation3 + $0xc8] sm:$0xff]
        %v314 = vld [vmem:[#allocation3 + $0xd0] sm:$0xff]
        %v315 = vld [vmem:[#allocation3 + $0xd8] sm:$0xff]
        %v316 = vld [vmem:[#allocation3 + $0xe0] sm:$0xff]
        %v317 = vld [vmem:[#allocation3 + $0xe8] sm:$0xff]
        %v318 = vld [vmem:[#allocation3 + $0xf0] sm:$0xff]
        %v319 = vld [vmem:[#allocation3 + $0xf8] sm:$0xff]
        %v320 = vpack.c.bf16 %v290, %v288
        %v321 = vpack.c.bf16 %v291, %v289
        %v322 = vpack.c.bf16 %v294, %v292
        %v323 = vpack.c.bf16 %v295, %v293
        %v324 = vpack.c.bf16 %v298, %v296
        %v325 = vpack.c.bf16 %v299, %v297
        %v326 = vpack.c.bf16 %v302, %v300
        %v327 = vpack.c.bf16 %v303, %v301
        %v328 = vpack.c.bf16 %v306, %v304
        %v329 = vpack.c.bf16 %v307, %v305
        %v330 = vpack.c.bf16 %v310, %v308
        %v331 = vpack.c.bf16 %v311, %v309
        %v332 = vpack.c.bf16 %v314, %v312
        %v333 = vpack.c.bf16 %v315, %v313
        %v334 = vpack.c.bf16 %v318, %v316
        %v335 = vpack.c.bf16 %v319, %v317
        %v336 = vld [vmem:[#allocation2] sm:$0xff]
        %v337 = vld [vmem:[#allocation2 + $0x8] sm:$0xff]
        %v338 = vld [vmem:[#allocation2 + $0x10] sm:$0xff]
        %v339 = vld [vmem:[#allocation2 + $0x18] sm:$0xff]
        %v340 = vld [vmem:[#allocation2 + $0x20] sm:$0xff]
        %v341 = vld [vmem:[#allocation2 + $0x28] sm:$0xff]
        %v342 = vld [vmem:[#allocation2 + $0x30] sm:$0xff]
        %v343 = vld [vmem:[#allocation2 + $0x38] sm:$0xff]
        %v344 = vld [vmem:[#allocation2 + $0x40] sm:$0xff]
        %v345 = vld [vmem:[#allocation2 + $0x48] sm:$0xff]
        %v346 = vld [vmem:[#allocation2 + $0x50] sm:$0xff]
        %v347 = vld [vmem:[#allocation2 + $0x58] sm:$0xff]
        %v348 = vld [vmem:[#allocation2 + $0x60] sm:$0xff]
        %v349 = vld [vmem:[#allocation2 + $0x68] sm:$0xff]
        %v350 = vld [vmem:[#allocation2 + $0x70] sm:$0xff]
        %v351 = vld [vmem:[#allocation2 + $0x78] sm:$0xff]
        %v352 = vld [vmem:[%s227] sm:$0xf]
        %v353 = vld [vmem:[%s227 + $0x4] sm:$0xf]
        %v354 = vld [vmem:[%s227 + $0x8] sm:$0xf]
        %v355 = vld [vmem:[%s227 + $0xc] sm:$0xf]
        %v356 = vld [vmem:[%s227 + $0x10] sm:$0xf]
        %v357 = vld [vmem:[%s227 + $0x14] sm:$0xf]
        %v358 = vld [vmem:[%s227 + $0x18] sm:$0xf]
        %v359 = vld [vmem:[%s227 + $0x1c] sm:$0xf]
        %v360 = vld [vmem:[%s227 + $0x20] sm:$0xf]
        %v361 = vld [vmem:[%s227 + $0x24] sm:$0xf]
        %v362 = vld [vmem:[%s227 + $0x28] sm:$0xf]
        %v363 = vld [vmem:[%s227 + $0x2c] sm:$0xf]
        %v364 = vld [vmem:[%s227 + $0x30] sm:$0xf]
        %v365 = vld [vmem:[%s227 + $0x34] sm:$0xf]
        %v366 = vld [vmem:[%s227 + $0x38] sm:$0xf]
        %v367 = vld [vmem:[%s227 + $0x3c] sm:$0xf]
        %v368 = vld [vmem:[%s227 + $0x40] sm:$0xf]
        %v369 = vld [vmem:[%s227 + $0x44] sm:$0xf]
        %v370 = vld [vmem:[%s227 + $0x48] sm:$0xf]
        %v371 = vld [vmem:[%s227 + $0x4c] sm:$0xf]
        %v372 = vld [vmem:[%s227 + $0x50] sm:$0xf]
        %v373 = vld [vmem:[%s227 + $0x54] sm:$0xf]
        %v374 = vld [vmem:[%s227 + $0x58] sm:$0xf]
        %v375 = vld [vmem:[%s227 + $0x5c] sm:$0xf]
        %v376 = vld [vmem:[%s227 + $0x60] sm:$0xf]
        %v377 = vld [vmem:[%s227 + $0x64] sm:$0xf]
        %v378 = vld [vmem:[%s227 + $0x68] sm:$0xf]
        %v379 = vld [vmem:[%s227 + $0x6c] sm:$0xf]
        %v380 = vld [vmem:[%s227 + $0x70] sm:$0xf]
        %v381 = vld [vmem:[%s227 + $0x74] sm:$0xf]
        %v382 = vld [vmem:[%s227 + $0x78] sm:$0xf]
        %v383 = vld [vmem:[%s227 + $0x7c] sm:$0xf]
        %v416 = vunpack.c.l.b16 %v352
        %v417 = vunpack.c.l.b16 %v353
        %v418 = vunpack.c.l.b16 %v354
        %v419 = vunpack.c.l.b16 %v355
        %v420 = vunpack.c.l.b16 %v356
        %v421 = vunpack.c.l.b16 %v357
        %v422 = vunpack.c.l.b16 %v358
        %v423 = vunpack.c.l.b16 %v359
        %v424 = vunpack.c.l.b16 %v360
        %v425 = vunpack.c.l.b16 %v361
        %v426 = vunpack.c.l.b16 %v362
        %v427 = vunpack.c.l.b16 %v363
        %v428 = vunpack.c.l.b16 %v364
        %v429 = vunpack.c.l.b16 %v365
        %v430 = vunpack.c.l.b16 %v366
        %v431 = vunpack.c.l.b16 %v367
        %v432 = vunpack.c.l.b16 %v368
        %v433 = vunpack.c.l.b16 %v369
        %v434 = vunpack.c.l.b16 %v370
        %v435 = vunpack.c.l.b16 %v371
        %v436 = vunpack.c.l.b16 %v372
        %v437 = vunpack.c.l.b16 %v373
        %v438 = vunpack.c.l.b16 %v374
        %v439 = vunpack.c.l.b16 %v375
        %v440 = vunpack.c.l.b16 %v376
        %v441 = vunpack.c.l.b16 %v377
        %v442 = vunpack.c.l.b16 %v378
        %v443 = vunpack.c.l.b16 %v379
        %v444 = vunpack.c.l.b16 %v380
        %v445 = vunpack.c.l.b16 %v381
        %v446 = vunpack.c.l.b16 %v382
        %v447 = vunpack.c.l.b16 %v383
        %v448 = vpack.c.b16 %v417, %v416
        %v449 = vpack.c.b16 %v419, %v418
        %v450 = vpack.c.b16 %v421, %v420
        %v451 = vpack.c.b16 %v423, %v422
        %v452 = vpack.c.b16 %v425, %v424
        %v453 = vpack.c.b16 %v427, %v426
        %v454 = vpack.c.b16 %v429, %v428
        %v455 = vpack.c.b16 %v431, %v430
        %v456 = vpack.c.b16 %v433, %v432
        %v457 = vpack.c.b16 %v435, %v434
        %v458 = vpack.c.b16 %v437, %v436
        %v459 = vpack.c.b16 %v439, %v438
        %v460 = vpack.c.b16 %v441, %v440
        %v461 = vpack.c.b16 %v443, %v442
        %v462 = vpack.c.b16 %v445, %v444
        %v463 = vpack.c.b16 %v447, %v446
        %480 = vmatprep.subr.bf16.mxu0 0
        %481 = vmatpush1.bf16.msra.mxu0 %v455
        %482 = vmatprep.subr.bf16.mxu0 0
        %483 = vmatpush1.bf16.msra.mxu0 %v454
        %484 = vmatprep.subr.bf16.mxu0 0
        %485 = vmatpush1.bf16.msra.mxu0 %v453
        %486 = vmatprep.subr.bf16.mxu0 0
        %487 = vmatpush1.bf16.msra.mxu0 %v452
        %488 = vmatprep.subr.bf16.mxu0 0
        %489 = vmatpush1.bf16.msra.mxu0 %v451
        %490 = vmatprep.subr.bf16.mxu0 0
        %491 = vmatpush1.bf16.msra.mxu0 %v450
        %492 = vmatprep.subr.bf16.mxu0 0
        %493 = vmatpush1.bf16.msra.mxu0 %v449
        %494 = vmatprep.subr.bf16.mxu0 0
        %495 = vmatpush1.bf16.msra.mxu0 %v448
        %496 = vmatprep.subr.bf16.mxu0 0
        %497 = vmatpush2.bf16.msra.mxu0 %v463
        %498 = vmatprep.subr.bf16.mxu0 0
        %499 = vmatpush2.bf16.msra.mxu0 %v462
        %500 = vmatprep.subr.bf16.mxu0 0
        %501 = vmatpush2.bf16.msra.mxu0 %v461
        %502 = vmatprep.subr.bf16.mxu0 0
        %503 = vmatpush2.bf16.msra.mxu0 %v460
        %504 = vmatprep.subr.bf16.mxu0 0
        %505 = vmatpush2.bf16.msra.mxu0 %v459
        %506 = vmatprep.subr.bf16.mxu0 0
        %507 = vmatpush2.bf16.msra.mxu0 %v458
        %508 = vmatprep.subr.bf16.mxu0 0
        %509 = vmatpush2.bf16.msra.mxu0 %v457
        %510 = vmatprep.subr.bf16.mxu0 0
        %511 = vmatpush2.bf16.msra.mxu0 %v456
        %512 = vmatprep.mubr.bf16.mxu0 %v321
        %513 = vmatmul.mubr.bf16.gmra.mxu0 %v320
        %v514 = vpop.f32.mrf.mxu0
        %v515 = vadd.f32 0.0, %v514
        %v516 = vpop.f32.mrf.mxu0
        %v517 = vpop.f32.mrf.mxu0
        %v518 = vadd.f32 0.0, %v517
        %v519 = vpop.f32.mrf.mxu0
        %520 = vmatprep.mubr.bf16.mxu0 %v323
        %521 = vmatmul.mubr.bf16.gmra.mxu0 %v322
        %v522 = vpop.f32.mrf.mxu0
        %v523 = vadd.f32 0.0, %v522
        %v524 = vpop.f32.mrf.mxu0
        %v525 = vpop.f32.mrf.mxu0
        %v526 = vadd.f32 0.0, %v525
        %v527 = vpop.f32.mrf.mxu0
        %528 = vmatprep.mubr.bf16.mxu0 %v325
        %529 = vmatmul.mubr.bf16.gmra.mxu0 %v324
        %v530 = vpop.f32.mrf.mxu0
        %v531 = vadd.f32 0.0, %v530
        %v532 = vpop.f32.mrf.mxu0
        %v533 = vpop.f32.mrf.mxu0
        %v534 = vadd.f32 0.0, %v533
        %v535 = vpop.f32.mrf.mxu0
        %536 = vmatprep.mubr.bf16.mxu0 %v327
        %537 = vmatmul.mubr.bf16.gmra.mxu0 %v326
        %v538 = vpop.f32.mrf.mxu0
        %v539 = vadd.f32 0.0, %v538
        %v540 = vpop.f32.mrf.mxu0
        %v541 = vpop.f32.mrf.mxu0
        %v542 = vadd.f32 0.0, %v541
        %v543 = vpop.f32.mrf.mxu0
        %544 = vmatprep.mubr.bf16.mxu0 %v329
        %545 = vmatmul.mubr.bf16.gmra.mxu0 %v328
        %v546 = vpop.f32.mrf.mxu0
        %v547 = vadd.f32 0.0, %v546
        %v548 = vpop.f32.mrf.mxu0
        %v549 = vpop.f32.mrf.mxu0
        %v550 = vadd.f32 0.0, %v549
        %v551 = vpop.f32.mrf.mxu0
        %552 = vmatprep.mubr.bf16.mxu0 %v331
        %553 = vmatmul.mubr.bf16.gmra.mxu0 %v330
        %v554 = vpop.f32.mrf.mxu0
        %v555 = vadd.f32 0.0, %v554
        %v556 = vpop.f32.mrf.mxu0
        %v557 = vpop.f32.mrf.mxu0
        %v558 = vadd.f32 0.0, %v557
        %v559 = vpop.f32.mrf.mxu0
        %560 = vmatprep.mubr.bf16.mxu0 %v333
        %561 = vmatmul.mubr.bf16.gmra.mxu0 %v332
        %v562 = vpop.f32.mrf.mxu0
        %v563 = vadd.f32 0.0, %v562
        %v564 = vpop.f32.mrf.mxu0
        %v565 = vpop.f32.mrf.mxu0
        %v566 = vadd.f32 0.0, %v565
        %v567 = vpop.f32.mrf.mxu0
        %568 = vmatprep.mubr.bf16.mxu0 %v335
        %569 = vmatmul.mubr.bf16.gmra.mxu0 %v334
        %v570 = vpop.f32.mrf.mxu0
        %v571 = vadd.f32 0.0, %v570
        %v572 = vpop.f32.mrf.mxu0
        %v573 = vpop.f32.mrf.mxu0
        %v574 = vadd.f32 0.0, %v573
        %v575 = vpop.f32.mrf.mxu0
        %576 = vdwg.mxu0
        %v577 = vadd.f32 %v336, %v515
        %v578 = vadd.f32 %v337, %v518
        %v579 = vadd.f32 %v338, %v523
        %v580 = vadd.f32 %v339, %v526
        %v581 = vadd.f32 %v340, %v531
        %v582 = vadd.f32 %v341, %v534
        %v583 = vadd.f32 %v342, %v539
        %v584 = vadd.f32 %v343, %v542
        %v585 = vadd.f32 %v344, %v547
        %v586 = vadd.f32 %v345, %v550
        %v587 = vadd.f32 %v346, %v555
        %v588 = vadd.f32 %v347, %v558
        %v589 = vadd.f32 %v348, %v563
        %v590 = vadd.f32 %v349, %v566
        %v591 = vadd.f32 %v350, %v571
        %v592 = vadd.f32 %v351, %v574
        %593 = vst [vmem:[#allocation2] sm:$0xff] %v577
        %594 = vst [vmem:[#allocation2 + $0x8] sm:$0xff] %v578
        %595 = vst [vmem:[#allocation2 + $0x10] sm:$0xff] %v579
        %596 = vst [vmem:[#allocation2 + $0x18] sm:$0xff] %v580
        %597 = vst [vmem:[#allocation2 + $0x20] sm:$0xff] %v581
        %598 = vst [vmem:[#allocation2 + $0x28] sm:$0xff] %v582
        %599 = vst [vmem:[#allocation2 + $0x30] sm:$0xff] %v583
        %600 = vst [vmem:[#allocation2 + $0x38] sm:$0xff] %v584
        %601 = vst [vmem:[#allocation2 + $0x40] sm:$0xff] %v585
        %602 = vst [vmem:[#allocation2 + $0x48] sm:$0xff] %v586
        %603 = vst [vmem:[#allocation2 + $0x50] sm:$0xff] %v587
        %604 = vst [vmem:[#allocation2 + $0x58] sm:$0xff] %v588
        %605 = vst [vmem:[#allocation2 + $0x60] sm:$0xff] %v589
        %606 = vst [vmem:[#allocation2 + $0x68] sm:$0xff] %v590
        %607 = vst [vmem:[#allocation2 + $0x70] sm:$0xff] %v591
        %608 = vst [vmem:[#allocation2 + $0x78] sm:$0xff] %v592
        // Predicated region
        $region45: #{tpu_custom_call.1} parent=31 // pred_check
          %p609 = pneg %p261
        $region46: #{tpu_custom_call.1} parent=31 // pred_check_branch
          %611 = sbr.rel (%p609) target = $region48
        $region47: #{tpu_custom_call.1} parent=31 // pred_region
          %v612 = vld [vmem:[#allocation2] sm:$0xff]
          %v613 = vld [vmem:[#allocation2 + $0x8] sm:$0xff]
          %v614 = vld [vmem:[#allocation2 + $0x10] sm:$0xff]
          %v615 = vld [vmem:[#allocation2 + $0x18] sm:$0xff]
          %v616 = vld [vmem:[#allocation2 + $0x20] sm:$0xff]
          %v617 = vld [vmem:[#allocation2 + $0x28] sm:$0xff]
          %v618 = vld [vmem:[#allocation2 + $0x30] sm:$0xff]
          %v619 = vld [vmem:[#allocation2 + $0x38] sm:$0xff]
          %v620 = vld [vmem:[#allocation2 + $0x40] sm:$0xff]
          %v621 = vld [vmem:[#allocation2 + $0x48] sm:$0xff]
          %v622 = vld [vmem:[#allocation2 + $0x50] sm:$0xff]
          %v623 = vld [vmem:[#allocation2 + $0x58] sm:$0xff]
          %v624 = vld [vmem:[#allocation2 + $0x60] sm:$0xff]
          %v625 = vld [vmem:[#allocation2 + $0x68] sm:$0xff]
          %v626 = vld [vmem:[#allocation2 + $0x70] sm:$0xff]
          %v627 = vld [vmem:[#allocation2 + $0x78] sm:$0xff]
          %v628 = vmax.f32 %v612, 0.0
          %v629 = vmax.f32 %v613, 0.0
          %v630 = vmax.f32 %v614, 0.0
          %v631 = vmax.f32 %v615, 0.0
          %v632 = vmax.f32 %v616, 0.0
          %v633 = vmax.f32 %v617, 0.0
          %v634 = vmax.f32 %v618, 0.0
          %v635 = vmax.f32 %v619, 0.0
          %v636 = vmax.f32 %v620, 0.0
          %v637 = vmax.f32 %v621, 0.0
          %v638 = vmax.f32 %v622, 0.0
          %v639 = vmax.f32 %v623, 0.0
          %v640 = vmax.f32 %v624, 0.0
          %v641 = vmax.f32 %v625, 0.0
          %v642 = vmax.f32 %v626, 0.0
          %v643 = vmax.f32 %v627, 0.0
          %644 = vst [vmem:[%s252] sm:$0xff] %v628
          %645 = vst [vmem:[%s252 + $0x8] sm:$0xff] %v629
          %646 = vst [vmem:[%s252 + $0x10] sm:$0xff] %v630
          %647 = vst [vmem:[%s252 + $0x18] sm:$0xff] %v631
          %648 = vst [vmem:[%s252 + $0x20] sm:$0xff] %v632
          %649 = vst [vmem:[%s252 + $0x28] sm:$0xff] %v633
          %650 = vst [vmem:[%s252 + $0x30] sm:$0xff] %v634
          %651 = vst [vmem:[%s252 + $0x38] sm:$0xff] %v635
          %652 = vst [vmem:[%s252 + $0x40] sm:$0xff] %v636
          %653 = vst [vmem:[%s252 + $0x48] sm:$0xff] %v637
          %654 = vst [vmem:[%s252 + $0x50] sm:$0xff] %v638
          %655 = vst [vmem:[%s252 + $0x58] sm:$0xff] %v639
          %656 = vst [vmem:[%s252 + $0x60] sm:$0xff] %v640
          %657 = vst [vmem:[%s252 + $0x68] sm:$0xff] %v641
          %658 = vst [vmem:[%s252 + $0x70] sm:$0xff] %v642
          %659 = vst [vmem:[%s252 + $0x78] sm:$0xff] %v643
        $region48: #{tpu_custom_call.1} parent=31 // pred_fallthru
          _
        %s660 = sand.u32 %s132, 1
        %s661 = scalar_lea.sflag [#allocation5], %s660
        %s662 = sand.u32 %s132, 1
        %s663 = smul.addr %s662, 128
        %s664 = scalar_lea.vmem [#allocation8], %s663
        // Predicated region
        $region49: #{tpu_custom_call.1} parent=31 // pred_check
          %p665 = pneg %p142
        $region50: #{tpu_custom_call.1} parent=31 // pred_check_branch
          %667 = sbr.rel (%p665) target = $region52
        $region51: #{tpu_custom_call.1} parent=31 // pred_region
          %s668 = smul.u32 16, %s26
          %s670 = ssub.s32 2048, 2048
          %671 = vsyncadd %s661, %s670
          %s672 = smul.addr %s668, 2
          %s673 = sadd.s32 %s27, %s672
          %s674 = smul.addr %s673, 128
          %s675 = scalar_lea.hbm %s3, %s674
          %s676 = sshll.u32 %s664, 4
          %s677 = int_to_ptr.vmem [resolvable:$true] %s676
          %682 = dma.vmem_to_hbm [thread:$0]  %s677, 2048, %s675, %s661, 128, 256, 8
        $region52: #{tpu_custom_call.1} parent=31 // pred_fallthru
          _
      $region32: #{tpu_custom_call.1} parent=5 // pred_fallthru
        _
      %p683 = scmp.le.s32.totalorder 2, %s16
      // Predicated region
      $region53: #{tpu_custom_call.1} parent=5 // pred_check
        %p684 = pneg %p683
      $region54: #{tpu_custom_call.1} parent=5 // pred_check_branch
        %686 = sbr.rel (%p684) target = $region56
      $region55: #{tpu_custom_call.1} parent=5 // pred_region
        %s687 = ssub.s32 %s16, 2
        // Predicated region
        $region57: #{tpu_custom_call.1} parent=55 // pred_check
          %p688 = pneg %p148
        $region58: #{tpu_custom_call.1} parent=55 // pred_check_branch
          %690 = sbr.rel (%p688) target = $region60
        $region59: #{tpu_custom_call.1} parent=55 // pred_region
          %s691 = sand.u32 %s133, 1
          %s692 = scalar_lea.sflag [#allocation5], %s691
          %s693 = sand.u32 %s133, 1
          %s694 = smul.addr %s693, 128
          %s695 = scalar_lea.vmem [#allocation8], %s694
          %696 = dma.done %s692, 2048
        $region60: #{tpu_custom_call.1} parent=55 // pred_fallthru
          _
      $region56: #{tpu_custom_call.1} parent=5 // pred_fallthru
        _
    $region6: #{tpu_custom_call.1} parent=1 // loop_footer
      %s20 = sadd.s32 1, %s16
    $region7: #{tpu_custom_call.1} parent=1 // loop_footer_branch
      %15 = sbr.rel target = $region3
    $region8: #{tpu_custom_call.1} parent=1 // loop_exit
      _
    %697 = vsyncpa [#allocation4], 1
    %s698 = scalar_lea.sflag [#allocation4], 1
    %699 = vsyncpa %s698, 1
    %700 = vsyncpa [#allocation7], 1
    %s701 = scalar_lea.sflag [#allocation7], 1
    %702 = vsyncpa %s701, 1
    %703 = vsyncpa [#allocation5], 1
    %s704 = scalar_lea.sflag [#allocation5], 1
    %705 = vsyncpa %s704, 1

</llo_original>
